<compile_context>
chip_gen: v7x
topology: tpu7x:2x2x1
jax: 0.10.0
libtpu: 0.0.40
codegen_flags: <defaults>
</compile_context>

<pallas_src>
import jax
import jax.numpy as jnp
from jax import lax
from jax.experimental import pallas as pl
from jax.experimental.pallas import tpu as pltpu


def _round_up(x, m):
    return ((x + m - 1) // m) * m


def _frobenius_linear_kernel(inv_norm_ref, x_ref, w_ref, b_ref, o_ref, acc_ref):
    k = pl.program_id(2)

    @pl.when(k == 0)
    def _():
        acc_ref[...] = jnp.zeros_like(acc_ref)

    # Contract last dims of x (tm, tk) and w (tn, tk): W consumed in (out, in)
    # layout, native-dtype operands, f32 accumulation on the MXU.
    acc_ref[...] += lax.dot_general(
        x_ref[...],
        w_ref[...],
        dimension_numbers=(((1,), (1,)), ((), ())),
        preferred_element_type=jnp.float32,
    )

    @pl.when(k == pl.num_programs(2) - 1)
    def _():
        inv_norm = inv_norm_ref[0]  # scalar (SMEM): 1 / ||W||_F
        y = acc_ref[...] * inv_norm + b_ref[...].astype(jnp.float32)
        o_ref[...] = y.astype(o_ref.dtype)


def frobenius_linear(x, weight, bias, *, tm=256, tn=256, tk=256):
    """x: (..., in_features); weight: (out, in); bias: (out,)."""
    n_out, k_in = weight.shape
    lead_shape = x.shape[:-1]
    x2d = x.reshape(-1, k_in)
    m = x2d.shape[0]

    # Global Frobenius inv-norm: one cheap XLA reduction over the unpadded W,
    # fused sqrt+reciprocal via rsqrt, passed as a single SMEM scalar.
    w32 = weight.astype(jnp.float32)
    inv_norm = lax.rsqrt(jnp.sum(w32 * w32)).reshape(1)

    # Tile plan: shrink default 256-tiles to the padded problem size while
    # keeping (8, 128) alignment (sublane / lane).
    tm = min(tm, _round_up(m, 8))
    tn = min(tn, _round_up(n_out, 128))
    tk = min(tk, _round_up(k_in, 128))

    mp = _round_up(m, tm)
    np_ = _round_up(n_out, tn)
    kp = _round_up(k_in, tk)

    # Zero padding preserves semantics: padded K adds 0 to the contraction,
    # padded M rows / N cols are sliced off below, bias padding is discarded,
    # and inv_norm was computed on the unpadded weight. Padding N also makes
    # the output lane-dense (multiple of 128).
    x_p = x2d if (mp == m and kp == k_in) else jnp.pad(
        x2d, ((0, mp - m), (0, kp - k_in)))
    w_p = weight if (np_ == n_out and kp == k_in) else jnp.pad(
        weight, ((0, np_ - n_out), (0, kp - k_in)))
    b_p = bias if np_ == n_out else jnp.pad(bias, ((0, np_ - n_out),))
    b_p = b_p.reshape(1, np_)

    grid = (mp // tm, np_ // tn, kp // tk)

    out = pl.pallas_call(
        _frobenius_linear_kernel,
        out_shape=jax.ShapeDtypeStruct((mp, np_), x.dtype),
        grid_spec=pltpu.PrefetchScalarGridSpec(
            num_scalar_prefetch=0,
            grid=grid,
            in_specs=[
                # 1/norm scalar, resident in SMEM for the whole grid.
                pl.BlockSpec(memory_space=pltpu.MemorySpace.SMEM),
                # activations tile (tm, tk)
                pl.BlockSpec((tm, tk), lambda i, j, k: (i, k)),
                # weight tile (tn, tk) in native (out, in) layout
                pl.BlockSpec((tn, tk), lambda i, j, k: (j, k)),
                # bias tile (1, tn), only consumed in the epilogue
                pl.BlockSpec((1, tn), lambda i, j, k: (0, j)),
            ],
            out_specs=pl.BlockSpec((tm, tn), lambda i, j, k: (i, j)),
            scratch_shapes=[pltpu.VMEM((tm, tn), jnp.float32)],
        ),
        compiler_params=pltpu.CompilerParams(
            dimension_semantics=("parallel", "parallel", "arbitrary")),
    )(inv_norm, x_p, w_p, b_p)

    if mp != m or np_ != n_out:
        out = out[:m, :n_out]
    return out.reshape(*lead_shape, n_out)


def reference_frobenius_linear(x, weight, bias, precision=None):
    w32 = weight.astype(jnp.float32)
    norm = jnp.sqrt(jnp.sum(jnp.abs(w32) ** 2))
    w_n = weight / norm
    y = jnp.einsum("...k,nk->...n", x, w_n, precision=precision)
    return y + bias


if __name__ == "__main__":
    key = jax.random.PRNGKey(0)

    # --- Test 1: Linear(32 -> 64) on (2, 8) tokens (single-block grid). ---
    in_features, out_features = 32, 64
    kx, kw, kb = jax.random.split(key, 3)
    bound = 1.0 / (in_features ** 0.5)
    x = jax.random.normal(kx, (2, 8, in_features), dtype=jnp.float32)
    weight = jax.random.uniform(
        kw, (out_features, in_features), minval=-bound, maxval=bound,
        dtype=jnp.float32)
    bias = jax.random.uniform(
        kb, (out_features,), minval=-bound, maxval=bound, dtype=jnp.float32)

    y = frobenius_linear(x, weight, bias)
    jax.block_until_ready(y)
    y_ref = reference_frobenius_linear(x, weight, bias)
    assert y.shape == (2, 8, out_features)
    assert jnp.allclose(y, y_ref, atol=1e-5, rtol=1e-5)

    # --- Test 2: Linear(384 -> 320) on (4, 96) tokens (multi-block grid with
    #     K-axis accumulation and M/N/K padding). ---
    in_features2, out_features2 = 384, 320
    kx2, kw2, kb2 = jax.random.split(jax.random.PRNGKey(1), 3)
    bound2 = 1.0 / (in_features2 ** 0.5)
    x2 = jax.random.normal(kx2, (4, 96, in_features2), dtype=jnp.float32)
    weight2 = jax.random.uniform(
        kw2, (out_features2, in_features2), minval=-bound2, maxval=bound2,
        dtype=jnp.float32)
    bias2 = jax.random.uniform(
        kb2, (out_features2,), minval=-bound2, maxval=bound2, dtype=jnp.float32)

    y2 = frobenius_linear(x2, weight2, bias2)
    jax.block_until_ready(y2)
    y2_ref = reference_frobenius_linear(
        x2, weight2, bias2, precision=lax.Precision.HIGHEST)
    assert y2.shape == (4, 96, out_features2)
    assert jnp.allclose(y2, y2_ref, atol=1e-4, rtol=1e-4)

    print("KERNEL_OK")
</pallas_src>

<mosaic_0001>
module attributes {stable_mosaic.version = 11 : i64} {
  func.func @_frobenius_linear_kernel(%arg0: i32, %arg1: i32, %arg2: i32, %arg3: memref<1xf32, #tpu.memory_space<smem>>, %arg4: memref<16x128xf32, #tpu.memory_space<vmem>>, %arg5: memref<128x128xf32, #tpu.memory_space<vmem>>, %arg6: memref<1x128xf32, #tpu.memory_space<vmem>>, %arg7: memref<16x128xf32, #tpu.memory_space<vmem>>, %arg8: memref<16x128xf32, #tpu.memory_space<vmem>>) attributes {dimension_semantics = [#tpu.dimension_semantics<parallel>, #tpu.dimension_semantics<parallel>, #tpu.dimension_semantics<arbitrary>], iteration_bounds = array<i64: 1, 1, 1>, scalar_prefetch = 0 : i64, scratch_operands = 1 : i64, tpu.core_type = #tpu.core_type<tc>, window_params = [{transform_indices = @transform_0, window_bounds = array<i64: 1>}, {transform_indices = @transform_1, window_bounds = array<i64: 16, 128>}, {transform_indices = @transform_2, window_bounds = array<i64: 128, 128>}, {transform_indices = @transform_3, window_bounds = array<i64: 1, 128>}, {transform_indices = @transform_4, window_bounds = array<i64: 16, 128>}]} {
    %c0_i32 = arith.constant 0 : i32
    %0 = arith.cmpi eq, %arg2, %c0_i32 : i32
    %1 = arith.extui %0 : i1 to i32
    %c0_i32_0 = arith.constant 0 : i32
    %2 = arith.cmpi ne, %1, %c0_i32_0 : i32
    scf.if %2 {
      %cst_10 = arith.constant 0.000000e+00 : f32
      %12 = vector.broadcast %cst_10 : f32 to vector<16x128xf32>
      %c0_11 = arith.constant 0 : index
      %c0_12 = arith.constant 0 : index
      %13 = vector.load %arg8[%c0_11, %c0_12] : memref<16x128xf32, #tpu.memory_space<vmem>>, vector<16x128xf32>
      tpu.vector_store %arg8[%c0_11, %c0_12], %12 {strides = array<i32>} : memref<16x128xf32, #tpu.memory_space<vmem>>, vector<16x128xf32>,
    } else {
    }
    %c0 = arith.constant 0 : index
    %c0_1 = arith.constant 0 : index
    %3 = vector.load %arg8[%c0, %c0_1] : memref<16x128xf32, #tpu.memory_space<vmem>>, vector<16x128xf32>
    %c0_2 = arith.constant 0 : index
    %c0_3 = arith.constant 0 : index
    %4 = vector.load %arg4[%c0_2, %c0_3] : memref<16x128xf32, #tpu.memory_space<vmem>>, vector<16x128xf32>
    %c0_4 = arith.constant 0 : index
    %c0_5 = arith.constant 0 : index
    %5 = vector.load %arg5[%c0_4, %c0_5] : memref<128x128xf32, #tpu.memory_space<vmem>>, vector<128x128xf32>
    %cst = arith.constant dense<0.000000e+00> : vector<16x128xf32>
    %6 = tpu.matmul %4, %5, %cst {dimension_numbers = #tpu.dot_dimension_numbers<[1], [1], [0], [0], [0, 0, 1, 0], [], []>} : vector<16x128xf32>, vector<128x128xf32>, vector<16x128xf32> -> vector<16x128xf32>
    %7 = arith.addf %3, %6 : vector<16x128xf32>
    %c0_6 = arith.constant 0 : index
    %c0_7 = arith.constant 0 : index
    %8 = vector.load %arg8[%c0_6, %c0_7] : memref<16x128xf32, #tpu.memory_space<vmem>>, vector<16x128xf32>
    tpu.vector_store %arg8[%c0_6, %c0_7], %7 {strides = array<i32>} : memref<16x128xf32, #tpu.memory_space<vmem>>, vector<16x128xf32>,
    %c0_i32_8 = arith.constant 0 : i32
    %9 = arith.cmpi eq, %arg2, %c0_i32_8 : i32
    %10 = arith.extui %9 : i1 to i32
    %c0_i32_9 = arith.constant 0 : i32
    %11 = arith.cmpi ne, %10, %c0_i32_9 : i32
    scf.if %11 {
      %c0_10 = arith.constant 0 : index
      %12 = memref.load %arg3[%c0_10] : memref<1xf32, #tpu.memory_space<smem>>
      %c0_11 = arith.constant 0 : index
      %c0_12 = arith.constant 0 : index
      %13 = vector.load %arg8[%c0_11, %c0_12] : memref<16x128xf32, #tpu.memory_space<vmem>>, vector<16x128xf32>
      %14 = vector.broadcast %12 : f32 to vector<16x128xf32>
      %15 = arith.mulf %13, %14 : vector<16x128xf32>
      %c0_13 = arith.constant 0 : index
      %c0_14 = arith.constant 0 : index
      %16 = vector.load %arg6[%c0_13, %c0_14] : memref<1x128xf32, #tpu.memory_space<vmem>>, vector<1x128xf32>
      %17 = vector.broadcast %16 : vector<1x128xf32> to vector<16x128xf32>
      %18 = arith.addf %15, %17 : vector<16x128xf32>
      %c0_15 = arith.constant 0 : index
      %c0_16 = arith.constant 0 : index
      %19 = vector.load %arg7[%c0_15, %c0_16] : memref<16x128xf32, #tpu.memory_space<vmem>>, vector<16x128xf32>
      tpu.vector_store %arg7[%c0_15, %c0_16], %18 {strides = array<i32>} : memref<16x128xf32, #tpu.memory_space<vmem>>, vector<16x128xf32>,
    } else {
    }
    return
  }
  func.func @transform_0(%arg0: i32, %arg1: i32, %arg2: i32) -> i32 {
    %c0_i32 = arith.constant 0 : i32
    %c0_i32_0 = arith.constant 0 : i32
    return %c0_i32 : i32
  }
  func.func @transform_1(%arg0: i32, %arg1: i32, %arg2: i32) -> (i32, i32) {
    %c0_i32 = arith.constant 0 : i32
    return %arg0, %arg2 : i32, i32
  }
  func.func @transform_2(%arg0: i32, %arg1: i32, %arg2: i32) -> (i32, i32) {
    %c0_i32 = arith.constant 0 : i32
    return %arg1, %arg2 : i32, i32
  }
  func.func @transform_3(%arg0: i32, %arg1: i32, %arg2: i32) -> (i32, i32) {
    %c0_i32 = arith.constant 0 : i32
    %c0_i32_0 = arith.constant 0 : i32
    return %c0_i32, %arg1 : i32, i32
  }
  func.func @transform_4(%arg0: i32, %arg1: i32, %arg2: i32) -> (i32, i32) {
    %c0_i32 = arith.constant 0 : i32
    return %arg0, %arg1 : i32, i32
  }
}

</mosaic_0001>

<llo_original>
// kernel: tpu_custom_call.1
$region0: #{tpu_custom_call.1}
  #allocation0 [shape = 'u32[]', space=smem, size = 0x4, offset = 0x4, fixed_abs, tag = 'smem constant byte address 0x4 - core index']
  #allocation1 [shape = 'u32[144,128]{1,0:T(1,128)}', space=vmem, size = 0x12000, scoped, tag = 'internal scratch']
  #allocation2 [shape = 'f32[16,128]{1,0:T(8,128)}', space=vmem, size = 0x2000, scoped, tag = 'scratch operand']
  #allocation3 [shape = 'f32[1]{0:T(128)S(6)}', space=smem, size = 0x200, scoped, tag = 'scoped memory for tpu_custom_call.1']
  %s0 = inlined_call_operand.<no memory space> [shape: f32[1], index: 0, kind: input, shape index: {}]
  %s1 = inlined_call_operand.hbm [shape: f32[16,128], index: 1, kind: input, shape index: {}]
  %s2 = inlined_call_operand.hbm [shape: f32[128,128], index: 2, kind: input, shape index: {}]
  %s3 = inlined_call_operand.vmem [shape: f32[1,128], index: 3, kind: input, shape index: {}]
  %s4 = inlined_call_operand.hbm [shape: f32[16,128], index: 4, kind: output, shape index: {}]
  %s5 = sld [smem:[#allocation0]]
  $region42: #{tpu_custom_call.1} parent=0
    _
  %s7 = ssub.s32 1, %s5
  %s8 = scalar_select 0, %s7, %s5
  %9 = sst [smem:[#allocation3]] %s0
  $region1: #{tpu_custom_call.1} parent=0
    #allocation4 [shape = 'u8[8192]{0}', space=vmem, size = 0x2000, scoped, tag = 'input window, operand 1, single buffered']
    #allocation5 [shape = 's32[1]{0}', space=sflag, size = 0x4, scoped, tag = 'scoped memory for tpu_custom_call.1']
    #allocation6 [shape = 's32[1]{0}', space=sflag, size = 0x4, scoped, tag = 'scoped memory for tpu_custom_call.1']
    #allocation7 [shape = 'u8[65536]{0}', space=vmem, size = 0x10000, scoped, tag = 'input window, operand 2, single buffered']
    #allocation8 [shape = 's32[1]{0}', space=sflag, size = 0x4, scoped, tag = 'scoped memory for tpu_custom_call.1']
    #allocation9 [shape = 'u8[8192]{0}', space=vmem, size = 0x2000, scoped, tag = 'output window, operand 0, single buffered']
    %10 = vsyncpa [#allocation5], 0
    %11 = vsyncpa [#allocation8], 0
    %12 = vsyncpa [#allocation6], 0
    // Predicated region
    $region2: #{tpu_custom_call.1} parent=1 // pred_check
      _
    $region3: #{tpu_custom_call.1} parent=1 // pred_check_branch
      %14 = sbr.rel (0) target = $region5
    $region4: #{tpu_custom_call.1} parent=1 // pred_region
      _
    $region5: #{tpu_custom_call.1} parent=1 // pred_fallthru
      _
    // Predicated region
    $region6: #{tpu_custom_call.1} parent=1 // pred_check
      _
    $region7: #{tpu_custom_call.1} parent=1 // pred_check_branch
      %16 = sbr.rel (0) target = $region9
    $region8: #{tpu_custom_call.1} parent=1 // pred_region
      %s18 = ssub.s32 256, 256
      %19 = vsyncadd [#allocation5], %s18
      %s20 = sshll.u32 [#allocation4], 4
      %s21 = int_to_ptr.vmem [resolvable:$true] %s20
      %26 = dma.hbm_to_vmem [thread:$0]  %s1, 256, %s21, [#allocation5], 128, 128, 8
    $region9: #{tpu_custom_call.1} parent=1 // pred_fallthru
      _
    // Predicated region
    $region10: #{tpu_custom_call.1} parent=1 // pred_check
      _
    $region11: #{tpu_custom_call.1} parent=1 // pred_check_branch
      %28 = sbr.rel (0) target = $region13
    $region12: #{tpu_custom_call.1} parent=1 // pred_region
      %s30 = ssub.s32 2048, 2048
      %31 = vsyncadd [#allocation8], %s30
      %s32 = sshll.u32 [#allocation7], 4
      %s33 = int_to_ptr.vmem [resolvable:$true] %s32
      %38 = dma.hbm_to_vmem [thread:$0]  %s2, 2048, %s33, [#allocation8], 128, 128, 8
    $region13: #{tpu_custom_call.1} parent=1 // pred_fallthru
      _
    // Predicated region
    $region14: #{tpu_custom_call.1} parent=1 // pred_check
      _
    $region15: #{tpu_custom_call.1} parent=1 // pred_check_branch
      %40 = sbr.rel (0) target = $region17
    $region16: #{tpu_custom_call.1} parent=1 // pred_region
      _
    $region17: #{tpu_custom_call.1} parent=1 // pred_fallthru
      _
    // Predicated region
    $region18: #{tpu_custom_call.1} parent=1 // pred_check
      _
    $region19: #{tpu_custom_call.1} parent=1 // pred_check_branch
      %42 = sbr.rel (0) target = $region21
    $region20: #{tpu_custom_call.1} parent=1 // pred_region
      %43 = dma.done [#allocation5], 256
    $region21: #{tpu_custom_call.1} parent=1 // pred_fallthru
      _
    // Predicated region
    $region22: #{tpu_custom_call.1} parent=1 // pred_check
      _
    $region23: #{tpu_custom_call.1} parent=1 // pred_check_branch
      %45 = sbr.rel (0) target = $region25
    $region24: #{tpu_custom_call.1} parent=1 // pred_region
      %46 = dma.done [#allocation8], 2048
    $region25: #{tpu_custom_call.1} parent=1 // pred_fallthru
      _
    %p47 = scmp.eq.s32.totalorder 0, 0
    // Predicated region
    $region26: #{tpu_custom_call.1} parent=1 // pred_check
      %p48 = pneg %p47
    $region27: #{tpu_custom_call.1} parent=1 // pred_check_branch
      %50 = sbr.rel (%p48) target = $region29
    $region28: #{tpu_custom_call.1} parent=1 // pred_region
      %51 = vst [vmem:[#allocation2] sm:$0xff] 0.0
      %52 = vst [vmem:[#allocation2 + $0x8] sm:$0xff] 0.0
    $region29: #{tpu_custom_call.1} parent=1 // pred_fallthru
      _
    %v53 = vld [vmem:[#allocation2] sm:$0xff]
    %v54 = vld [vmem:[#allocation2 + $0x8] sm:$0xff]
    %v55 = vld [vmem:[#allocation4] sm:$0xff]
    %v56 = vld [vmem:[#allocation4 + $0x8] sm:$0xff]
    %v57 = vld [vmem:[#allocation7] sm:$0xff]
    %v58 = vld [vmem:[#allocation7 + $0x8] sm:$0xff]
    %v59 = vld [vmem:[#allocation7 + $0x10] sm:$0xff]
    %v60 = vld [vmem:[#allocation7 + $0x18] sm:$0xff]
    %v61 = vld [vmem:[#allocation7 + $0x20] sm:$0xff]
    %v62 = vld [vmem:[#allocation7 + $0x28] sm:$0xff]
    %v63 = vld [vmem:[#allocation7 + $0x30] sm:$0xff]
    %v64 = vld [vmem:[#allocation7 + $0x38] sm:$0xff]
    %v65 = vld [vmem:[#allocation7 + $0x40] sm:$0xff]
    %v66 = vld [vmem:[#allocation7 + $0x48] sm:$0xff]
    %v67 = vld [vmem:[#allocation7 + $0x50] sm:$0xff]
    %v68 = vld [vmem:[#allocation7 + $0x58] sm:$0xff]
    %v69 = vld [vmem:[#allocation7 + $0x60] sm:$0xff]
    %v70 = vld [vmem:[#allocation7 + $0x68] sm:$0xff]
    %v71 = vld [vmem:[#allocation7 + $0x70] sm:$0xff]
    %v72 = vld [vmem:[#allocation7 + $0x78] sm:$0xff]
    %73 = vmatprep.subr.mxu0 0.0
    %74 = vmatpush1.xpose.msra.mxu0 %v57
    %75 = vmatprep.subr.mxu0 0.0
    %76 = vmatpush1.xpose.msra.mxu0 %v58
    %77 = vmatprep.subr.mxu0 0.0
    %78 = vmatpush1.xpose.msra.mxu0 %v59
    %79 = vmatprep.subr.mxu0 0.0
    %80 = vmatpush1.xpose.msra.mxu0 %v60
    %81 = vmatprep.subr.mxu0 0.0
    %82 = vmatpush1.xpose.msra.mxu0 %v61
    %83 = vmatprep.subr.mxu0 0.0
    %84 = vmatpush1.xpose.msra.mxu0 %v62
    %85 = vmatprep.subr.mxu0 0.0
    %86 = vmatpush1.xpose.msra.mxu0 %v63
    %87 = vmatprep.subr.mxu0 0.0
    %88 = vmatpush1.xpose.msra.mxu0 %v64
    %89 = vmatprep.subr.mxu0 0.0
    %90 = vmatpush1.xpose.msra.mxu0 %v65
    %91 = vmatprep.subr.mxu0 0.0
    %92 = vmatpush1.xpose.msra.mxu0 %v66
    %93 = vmatprep.subr.mxu0 0.0
    %94 = vmatpush1.xpose.msra.mxu0 %v67
    %95 = vmatprep.subr.mxu0 0.0
    %96 = vmatpush1.xpose.msra.mxu0 %v68
    %97 = vmatprep.subr.mxu0 0.0
    %98 = vmatpush1.xpose.msra.mxu0 %v69
    %99 = vmatprep.subr.mxu0 0.0
    %100 = vmatpush1.xpose.msra.mxu0 %v70
    %101 = vmatprep.subr.mxu0 0.0
    %102 = vmatpush1.xpose.msra.mxu0 %v71
    %103 = vmatprep.subr.mxu0 0.0
    %104 = vmatpush1.xpose.msra.mxu0 %v72
    %105 = vmatprep.subr.mxu0 0.0
    %106 = vmatpush1.xpose.msra.mxu0 0.0
    %107 = vmatprep.subr.mxu0 0.0
    %108 = vmatpush1.xpose.msra.mxu0 0.0
    %109 = vmatprep.subr.mxu0 0.0
    %110 = vmatpush1.xpose.msra.mxu0 0.0
    %111 = vmatprep.subr.mxu0 0.0
    %112 = vmatpush1.xpose.msra.mxu0 0.0
    %113 = vmatprep.subr.mxu0 0.0
    %114 = vmatpush1.xpose.msra.mxu0 0.0
    %115 = vmatprep.subr.mxu0 0.0
    %116 = vmatpush1.xpose.msra.mxu0 0.0
    %117 = vmatprep.subr.mxu0 0.0
    %118 = vmatpush1.xpose.msra.mxu0 0.0
    %119 = vmatprep.subr.mxu0 0.0
    %120 = vmatpush1.xpose.msra.mxu0 0.0
    %121 = vmatprep.subr.mxu0 0.0
    %122 = vmatpush1.xpose.msra.mxu0 0.0
    %123 = vmatprep.subr.mxu0 0.0
    %124 = vmatpush1.xpose.msra.mxu0 0.0
    %125 = vmatprep.subr.mxu0 0.0
    %126 = vmatpush1.xpose.msra.mxu0 0.0
    %127 = vmatprep.subr.mxu0 0.0
    %128 = vmatpush1.xpose.msra.mxu0 0.0
    %129 = vmatprep.subr.mxu0 0.0
    %130 = vmatpush1.xpose.msra.mxu0 0.0
    %131 = vmatprep.subr.mxu0 0.0
    %132 = vmatpush1.xpose.msra.mxu0 0.0
    %133 = vmatprep.subr.mxu0 0.0
    %134 = vmatpush1.xpose.msra.mxu0 0.0
    %135 = vmatprep.subr.mxu0 0.0
    %136 = vmatpush1.xpose.msra.mxu0 0.0
    %137 = vmatprep.mubr.f32.mxu0 0.0
    %138 = vmatmul.mubr.f32.gmra.mrb[0].mxu0 %v55
    %v139 = vpop.f32.mrb[0].mxu0
    %v140 = vadd.f32 0.0, %v139
    %v141 = vpop.f32.mrb[0].mxu0
    %142 = vmatprep.mubr.f32.mxu0 0.0
    %143 = vmatmul.mubr.f32.gmra.mrb[0].mxu0 %v56
    %v144 = vpop.f32.mrb[0].mxu0
    %v145 = vadd.f32 0.0, %v144
    %v146 = vpop.f32.mrb[0].mxu0
    %147 = vdwg.mxu0
    %v148 = vadd.f32 %v53, %v140
    %v149 = vadd.f32 %v54, %v145
    %150 = vst [vmem:[#allocation2] sm:$0xff] %v148
    %151 = vst [vmem:[#allocation2 + $0x8] sm:$0xff] %v149
    // Predicated region
    $region30: #{tpu_custom_call.1} parent=1 // pred_check
      %p152 = pneg %p47
    $region31: #{tpu_custom_call.1} parent=1 // pred_check_branch
      %154 = sbr.rel (%p152) target = $region33
    $region32: #{tpu_custom_call.1} parent=1 // pred_region
      %s155 = sld [smem:[#allocation3]]
      %v156 = vld [vmem:[#allocation2] sm:$0xff]
      %v157 = vld [vmem:[#allocation2 + $0x8] sm:$0xff]
      %v158 = vstv %s155
      %v159 = vmul.f32 %v156, %v158
      %v160 = vmul.f32 %v157, %v158
      %v161 = vld [vmem:[%s3] sm:$0x1]
      %v163 = vlaneseq
      %v164 = vshrl.u32 %v163, 7
      %v165 = vsub.s32 0, %v164
      %v166 = vrot.slane %v161, %v165
      %v168 = vadd.f32 %v159, %v166
      %v169 = vadd.f32 %v160, %v166
      %170 = vst [vmem:[#allocation9] sm:$0xff] %v168
      %171 = vst [vmem:[#allocation9 + $0x8] sm:$0xff] %v169
    $region33: #{tpu_custom_call.1} parent=1 // pred_fallthru
      _
    // Predicated region
    $region34: #{tpu_custom_call.1} parent=1 // pred_check
      _
    $region35: #{tpu_custom_call.1} parent=1 // pred_check_branch
      %173 = sbr.rel (0) target = $region37
    $region36: #{tpu_custom_call.1} parent=1 // pred_region
      %s175 = ssub.s32 256, 256
      %176 = vsyncadd [#allocation6], %s175
      %s177 = sshll.u32 [#allocation9], 4
      %s178 = int_to_ptr.vmem [resolvable:$true] %s177
      %183 = dma.vmem_to_hbm [thread:$0]  %s178, 256, %s4, [#allocation6], 128, 128, 8
    $region37: #{tpu_custom_call.1} parent=1 // pred_fallthru
      _
    // Predicated region
    $region38: #{tpu_custom_call.1} parent=1 // pred_check
      _
    $region39: #{tpu_custom_call.1} parent=1 // pred_check_branch
      %185 = sbr.rel (0) target = $region41
    $region40: #{tpu_custom_call.1} parent=1 // pred_region
      %186 = dma.done [#allocation6], 256
    $region41: #{tpu_custom_call.1} parent=1 // pred_fallthru
      _
    %187 = vsyncpa [#allocation5], 1
    %188 = vsyncpa [#allocation8], 1
    %189 = vsyncpa [#allocation6], 1

</llo_original>
